<compile_context>
chip_gen: v5e
topology: v5e:2x2
jax: 0.10.0
libtpu: 0.0.40
codegen_flags: <defaults>
</compile_context>

<pallas_src>
import jax
import jax.numpy as jnp
from jax import lax
from jax.experimental import pallas as pl
from jax.experimental.pallas import tpu as pltpu
import numpy as np


def _round_up(v, m):
    return ((v + m - 1) // m) * m


def _cdiv(a, b):
    return -(-a // b)


def _pick_tile(dim, max_tile, align):
    """Balanced tile: minimizes padding while keeping `align` layout.

    Returns (tile, padded_dim) with padded_dim == n_tiles * tile >= dim and
    tile <= max_tile (max_tile must be a multiple of align).
    """
    dim_a = _round_up(max(dim, 1), align)
    n = _cdiv(dim_a, max_tile)
    tile = _round_up(_cdiv(dim_a, n), align)
    return tile, n * tile


def _pick_tn(out_dim, tn_max):
    # Prefer 256-multiple output tiles (full 256x256 MXU fill on v6e/v7x) unless
    # that costs extra lane padding; v5e's 128x128 MXU is fine either way.
    t128, p128 = _pick_tile(out_dim, tn_max, 128)
    t256, p256 = _pick_tile(out_dim, tn_max, 256)
    return (t256, p256) if p256 <= p128 else (t128, p128)


def _vmem_budget_bytes():
    # Generation-aware VMEM budget: ~3/4 of physical capacity, capped at 100 MiB.
    # v7x: 64 MiB/TC -> ~48 MiB; v5e/v6e: 128 MiB -> ~96 MiB.
    cap = 64 * 1024 * 1024
    try:
        info = pltpu.get_tpu_info()
        cap = int(getattr(info, "vmem_capacity_bytes", cap) or cap)
    except Exception:
        pass
    return min(cap * 3 // 4, 100 * 1024 * 1024)


def _stage2_vmem_bytes(tm, tn, tk, x_bytes, w_bytes):
    # Double-buffered x/W/bias inputs + double-buffered f32 output + f32 acc.
    return (2 * (tm * tk * x_bytes + tk * tn * w_bytes + tn * 4)
            + 2 * tm * tn * 4
            + tm * tn * 4)


def _softplus_kernel(w_ref, o_ref):
    # Stable softplus: log(1 + exp(w)) == logaddexp(0, w). f32 math, then cast.
    w = w_ref[...].astype(jnp.float32)
    o_ref[...] = jnp.logaddexp(jnp.float32(0.0), w).astype(o_ref.dtype)


def _make_matmul_kernel(fuse_softplus, precision, compute_dtype):
    def kernel(x_ref, w_ref, b_ref, o_ref, acc_ref):
        k = pl.program_id(2)

        @pl.when(k == 0)
        def _():
            acc_ref[...] = jnp.zeros_like(acc_ref)

        w = w_ref[...]
        if fuse_softplus:
            # EUP transcendental slot is idle under the MXU-bound dot, so the
            # per-tile recompute is ~free and saves a full W HBM round trip.
            w = jnp.logaddexp(jnp.float32(0.0), w.astype(jnp.float32))
            w = w.astype(compute_dtype)

        acc_ref[...] += jnp.dot(
            x_ref[...], w,
            preferred_element_type=jnp.float32,
            precision=precision)

        @pl.when(k == pl.num_programs(2) - 1)
        def _():
            o_ref[...] = (acc_ref[...] + b_ref[...]).astype(o_ref.dtype)

    return kernel


def pdense(x, weights, bias, *, tm=1024, tn=512, tk=1024,
           compute_dtype=jnp.float32, fuse_softplus=None):
    """PDense: y[..., O] = x[..., I] @ softplus(W[I, O]) + b[O], f32 output.

    compute_dtype:
      jnp.float32 (default): exact module semantics (lax.Precision.HIGHEST;
        MXU emulates f32 with multiple bf16 passes).
      jnp.bfloat16: native single-pass MXU operands, f32 accumulation.
    fuse_softplus: None -> auto (fuse when W is re-streamed <= 4 times).
    """
    *lead, I = x.shape
    assert weights.ndim == 2 and weights.shape[0] == I, "weight/input mismatch"
    O = weights.shape[1]
    M = int(np.prod(lead)) if lead else 1

    compute_dtype = jnp.dtype(compute_dtype)
    cb = compute_dtype.itemsize
    sublane_align = 8 if cb >= 4 else 16          # packed sublanes for bf16
    is_f32 = compute_dtype == jnp.dtype(jnp.float32)
    precision = lax.Precision.HIGHEST if is_f32 else lax.Precision.DEFAULT

    # Clamp requested tile maxima to the VMEM budget (worst case: raw f32 W
    # streamed into the fused kernel).
    budget = _vmem_budget_bytes()
    tm_max = max(_round_up(tm, sublane_align), sublane_align)
    tn_max = max(_round_up(tn, 128), 128)
    tk_max = max(_round_up(tk, 128), 128)
    while _stage2_vmem_bytes(tm_max, tn_max, tk_max, cb, 4) > budget:
        if tk_max >= max(tm_max, 256):
            tk_max = max(128, _round_up(tk_max // 2, 128))
        elif tm_max > sublane_align:
            tm_max = max(sublane_align, _round_up(tm_max // 2, sublane_align))
        elif tn_max > 128:
            tn_max = max(128, _round_up(tn_max // 2, 128))
        else:
            break

    # Balanced tiles: minimize zero padding instead of rounding up to tile max.
    tm, M_pad = _pick_tile(M, tm_max, sublane_align)   # activation rows
    tk, I_pad = _pick_tile(I, tk_max, 128)             # contraction
    tn, O_pad = _pick_tn(O, tn_max)                    # lane-dense output cols

    m_tiles = M_pad // tm
    n_tiles = O_pad // tn
    k_tiles = I_pad // tk

    # Megacore occupancy (v7x: 2 TensorCores share the "parallel" grid axes):
    # make sure the (M, O) grid has >= 2 blocks when cheaply possible.
    if m_tiles * n_tiles == 1 and tn % 256 == 0:
        tn //= 2
        n_tiles = O_pad // tn

    if fuse_softplus is None:
        fuse_softplus = m_tiles <= 4
    w_elem_bytes = 4 if fuse_softplus else cb

    # --- wrapper-side data prep: a single cast+pad pass per operand ---
    x2d = x.reshape(M, I)
    if x2d.dtype != compute_dtype:
        x2d = x2d.astype(compute_dtype)
    if (M_pad, I_pad) != (M, I):
        x2d = jnp.pad(x2d, ((0, M_pad - M), (0, I_pad - I)))

    w_p = weights if weights.dtype == jnp.float32 else weights.astype(jnp.float32)
    if (I_pad, O_pad) != (I, O):
        w_p = jnp.pad(w_p, ((0, I_pad - I), (0, O_pad - O)))

    b_p = bias.astype(jnp.float32)
    if O_pad != O:
        b_p = jnp.pad(b_p, (0, O_pad - O))
    b_p = b_p.reshape(1, O_pad)

    if fuse_softplus:
        w_in = w_p                         # raw f32 W; softplus fused in-kernel
    else:
        # Stage 1: softplus(W) exactly once, amortized over many M tiles.
        w_in = pl.pallas_call(
            _softplus_kernel,
            out_shape=jax.ShapeDtypeStruct((I_pad, O_pad), compute_dtype),
            grid_spec=pltpu.PrefetchScalarGridSpec(
                num_scalar_prefetch=0,
                grid=(k_tiles, n_tiles),
                in_specs=[pl.BlockSpec((tk, tn), lambda i, j: (i, j))],
                out_specs=pl.BlockSpec((tk, tn), lambda i, j: (i, j)),
            ),
            compiler_params=pltpu.CompilerParams(
                dimension_semantics=("parallel", "parallel"),
                vmem_limit_bytes=budget),
            cost_estimate=pl.CostEstimate(
                flops=int(I_pad * O_pad),
                transcendentals=int(2 * I_pad * O_pad),
                bytes_accessed=int((4 + cb) * I_pad * O_pad)),
        )(w_p)

    kernel = _make_matmul_kernel(fuse_softplus, precision, compute_dtype)

    # Re-streaming-aware byte count: x is read n_tiles times, W m_tiles times.
    bytes_accessed = int(cb * M_pad * I_pad * n_tiles
                         + w_elem_bytes * I_pad * O_pad * m_tiles
                         + 4 * O_pad * m_tiles
                         + 4 * M_pad * O_pad)
    transcendentals = int(2 * I_pad * O_pad * m_tiles) if fuse_softplus else 0

    out = pl.pallas_call(
        kernel,
        out_shape=jax.ShapeDtypeStruct((M_pad, O_pad), jnp.float32),
        grid_spec=pltpu.PrefetchScalarGridSpec(
            num_scalar_prefetch=0,
            grid=(m_tiles, n_tiles, k_tiles),
            in_specs=[
                pl.BlockSpec((tm, tk), lambda i, j, k: (i, k)),
                pl.BlockSpec((tk, tn), lambda i, j, k: (k, j)),
                pl.BlockSpec((1, tn), lambda i, j, k: (0, j)),
            ],
            out_specs=pl.BlockSpec((tm, tn), lambda i, j, k: (i, j)),
            scratch_shapes=[pltpu.VMEM((tm, tn), jnp.float32)],
        ),
        compiler_params=pltpu.CompilerParams(
            dimension_semantics=("parallel", "parallel", "arbitrary"),
            vmem_limit_bytes=budget),
        cost_estimate=pl.CostEstimate(
            flops=int(2 * M_pad * I_pad * O_pad),
            transcendentals=transcendentals,
            bytes_accessed=bytes_accessed),
    )(x2d, w_in, b_p)

    out = out[:M, :O]
    return out.reshape(*lead, O)


def init_pdense_params(key, inputs, outputs):
    """Deterministic init mirroring torch kaiming_uniform_(a=sqrt(5)) on (I, O).

    torch._calculate_fan_in_and_fan_out on a 2-D (I, O) tensor uses
    fan_in = size(1) = outputs, which is what the reference module does.
    """
    a = np.sqrt(5.0)
    fan_in = outputs
    gain = np.sqrt(2.0 / (1.0 + a * a))
    bound = gain * np.sqrt(3.0 / fan_in)
    weights = jax.random.uniform(
        key, (inputs, outputs), dtype=jnp.float32, minval=-bound, maxval=bound
    )
    bias = jnp.zeros((outputs,), dtype=jnp.float32)  # torch.zeros, never re-init
    return weights, bias


def _reference(x, weights, bias):
    return jnp.matmul(x, jax.nn.softplus(weights),
                      precision=lax.Precision.HIGHEST) + bias


if __name__ == "__main__":
    key = jax.random.PRNGKey(0)
    k_w, k_x, k_w2, k_x2 = jax.random.split(key, 4)

    # Case 1: small shape consistent with the module: [..., I] -> [..., O].
    batch, seq, inputs, outputs = 2, 8, 32, 32
    weights, bias = init_pdense_params(k_w, inputs, outputs)
    x = jax.random.normal(k_x, (batch, seq, inputs), dtype=jnp.float32)

    y = pdense(x, weights, bias)
    jax.block_until_ready(y)
    np.testing.assert_allclose(
        np.asarray(y), np.asarray(_reference(x, weights, bias)),
        rtol=1e-5, atol=1e-4)

    # Case 2: non-aligned I/O and M spanning several row tiles, so the
    # (M, O, K) grid, balanced-tile padding and slicing paths are exercised.
    b2, s2, i2, o2 = 4, 300, 96, 200
    w2, bias2 = init_pdense_params(k_w2, i2, o2)
    x2 = jax.random.normal(k_x2, (b2, s2, i2), dtype=jnp.float32)
    ref2 = np.asarray(_reference(x2, w2, bias2))

    y2 = pdense(x2, w2, bias2)                         # auto (fused softplus)
    jax.block_until_ready(y2)
    np.testing.assert_allclose(np.asarray(y2), ref2, rtol=1e-5, atol=1e-4)

    y2b = pdense(x2, w2, bias2, fuse_softplus=False)   # two-stage path
    jax.block_until_ready(y2b)
    np.testing.assert_allclose(np.asarray(y2b), ref2, rtol=1e-5, atol=1e-4)

    # bf16 MXU-operand path (f32 accumulation): loose sanity bound vs f32 ref.
    y2c = pdense(x2, w2, bias2, compute_dtype=jnp.bfloat16)
    jax.block_until_ready(y2c)
    np.testing.assert_allclose(np.asarray(y2c), ref2, rtol=5e-2, atol=3e-1)

    print("KERNEL_OK")
</pallas_src>

<mosaic_0001>
module attributes {stable_mosaic.version = 11 : i64} {
  func.func @kernel(%arg0: i32, %arg1: i32, %arg2: i32, %arg3: memref<16x128xf32, #tpu.memory_space<vmem>>, %arg4: memref<128x128xf32, #tpu.memory_space<vmem>>, %arg5: memref<1x128xf32, #tpu.memory_space<vmem>>, %arg6: memref<16x128xf32, #tpu.memory_space<vmem>>, %arg7: memref<16x128xf32, #tpu.memory_space<vmem>>) attributes {dimension_semantics = [#tpu.dimension_semantics<parallel>, #tpu.dimension_semantics<parallel>, #tpu.dimension_semantics<arbitrary>], iteration_bounds = array<i64: 1, 1, 1>, scalar_prefetch = 0 : i64, scratch_operands = 1 : i64, tpu.core_type = #tpu.core_type<tc>, window_params = [{transform_indices = @transform_0, window_bounds = array<i64: 16, 128>}, {transform_indices = @transform_1, window_bounds = array<i64: 128, 128>}, {transform_indices = @transform_2, window_bounds = array<i64: 1, 128>}, {transform_indices = @transform_3, window_bounds = array<i64: 16, 128>}]} {
    %c0_i32 = arith.constant 0 : i32
    %0 = arith.cmpi eq, %arg2, %c0_i32 : i32
    %1 = arith.extui %0 : i1 to i32
    %c0_i32_0 = arith.constant 0 : i32
    %2 = arith.cmpi ne, %1, %c0_i32_0 : i32
    scf.if %2 {
      %cst_12 = arith.constant 0.000000e+00 : f32
      %26 = vector.broadcast %cst_12 : f32 to vector<16x128xf32>
      %c0_13 = arith.constant 0 : index
      %c0_14 = arith.constant 0 : index
      %27 = vector.load %arg7[%c0_13, %c0_14] : memref<16x128xf32, #tpu.memory_space<vmem>>, vector<16x128xf32>
      tpu.vector_store %arg7[%c0_13, %c0_14], %26 {strides = array<i32>} : memref<16x128xf32, #tpu.memory_space<vmem>>, vector<16x128xf32>,
    } else {
    }
    %c0 = arith.constant 0 : index
    %c0_1 = arith.constant 0 : index
    %3 = vector.load %arg4[%c0, %c0_1] : memref<128x128xf32, #tpu.memory_space<vmem>>, vector<128x128xf32>
    %cst = arith.constant 0.000000e+00 : f32
    %4 = vector.broadcast %cst : f32 to vector<128x128xf32>
    %5 = arith.maximumf %4, %3 : vector<128x128xf32>
    %6 = vector.broadcast %cst : f32 to vector<128x128xf32>
    %7 = arith.subf %6, %3 : vector<128x128xf32>
    %8 = arith.cmpf one, %7, %7 : vector<128x128xf32>
    %9 = vector.broadcast %cst : f32 to vector<128x128xf32>
    %10 = arith.addf %9, %3 : vector<128x128xf32>
    %11 = math.absf %7 : vector<128x128xf32>
    %cst_2 = arith.constant 0.000000e+00 : f32
    %12 = vector.broadcast %cst_2 : f32 to vector<128x128xf32>
    %13 = arith.subf %12, %11 : vector<128x128xf32>
    %14 = math.exp %13 : vector<128x128xf32>
    %15 = math.log1p %14 : vector<128x128xf32>
    %16 = arith.addf %5, %15 : vector<128x128xf32>
    %17 = arith.select %8, %10, %16 : vector<128x128xi1>, vector<128x128xf32>
    %c0_3 = arith.constant 0 : index
    %c0_4 = arith.constant 0 : index
    %18 = vector.load %arg7[%c0_3, %c0_4] : memref<16x128xf32, #tpu.memory_space<vmem>>, vector<16x128xf32>
    %c0_5 = arith.constant 0 : index
    %c0_6 = arith.constant 0 : index
    %19 = vector.load %arg3[%c0_5, %c0_6] : memref<16x128xf32, #tpu.memory_space<vmem>>, vector<16x128xf32>
    %cst_7 = arith.constant dense<0.000000e+00> : vector<16x128xf32>
    %20 = tpu.matmul %19, %17, %cst_7 {dimension_numbers = #tpu.dot_dimension_numbers<[1], [0], [0], [1], [0, 0, 1, 1], [], []>, precision = #tpu.contract_precision<fp32>} : vector<16x128xf32>, vector<128x128xf32>, vector<16x128xf32> -> vector<16x128xf32>
    %21 = arith.addf %18, %20 : vector<16x128xf32>
    %c0_8 = arith.constant 0 : index
    %c0_9 = arith.constant 0 : index
    %22 = vector.load %arg7[%c0_8, %c0_9] : memref<16x128xf32, #tpu.memory_space<vmem>>, vector<16x128xf32>
    tpu.vector_store %arg7[%c0_8, %c0_9], %21 {strides = array<i32>} : memref<16x128xf32, #tpu.memory_space<vmem>>, vector<16x128xf32>,
    %c0_i32_10 = arith.constant 0 : i32
    %23 = arith.cmpi eq, %arg2, %c0_i32_10 : i32
    %24 = arith.extui %23 : i1 to i32
    %c0_i32_11 = arith.constant 0 : i32
    %25 = arith.cmpi ne, %24, %c0_i32_11 : i32
    scf.if %25 {
      %c0_12 = arith.constant 0 : index
      %c0_13 = arith.constant 0 : index
      %26 = vector.load %arg7[%c0_12, %c0_13] : memref<16x128xf32, #tpu.memory_space<vmem>>, vector<16x128xf32>
      %c0_14 = arith.constant 0 : index
      %c0_15 = arith.constant 0 : index
      %27 = vector.load %arg5[%c0_14, %c0_15] : memref<1x128xf32, #tpu.memory_space<vmem>>, vector<1x128xf32>
      %28 = vector.broadcast %27 : vector<1x128xf32> to vector<16x128xf32>
      %29 = arith.addf %26, %28 : vector<16x128xf32>
      %c0_16 = arith.constant 0 : index
      %c0_17 = arith.constant 0 : index
      %30 = vector.load %arg6[%c0_16, %c0_17] : memref<16x128xf32, #tpu.memory_space<vmem>>, vector<16x128xf32>
      tpu.vector_store %arg6[%c0_16, %c0_17], %29 {strides = array<i32>} : memref<16x128xf32, #tpu.memory_space<vmem>>, vector<16x128xf32>,
    } else {
    }
    return
  }
  func.func @transform_0(%arg0: i32, %arg1: i32, %arg2: i32) -> (i32, i32) {
    %c0_i32 = arith.constant 0 : i32
    return %arg0, %arg2 : i32, i32
  }
  func.func @transform_1(%arg0: i32, %arg1: i32, %arg2: i32) -> (i32, i32) {
    %c0_i32 = arith.constant 0 : i32
    return %arg2, %arg1 : i32, i32
  }
  func.func @transform_2(%arg0: i32, %arg1: i32, %arg2: i32) -> (i32, i32) {
    %c0_i32 = arith.constant 0 : i32
    %c0_i32_0 = arith.constant 0 : i32
    return %c0_i32, %arg1 : i32, i32
  }
  func.func @transform_3(%arg0: i32, %arg1: i32, %arg2: i32) -> (i32, i32) {
    %c0_i32 = arith.constant 0 : i32
    return %arg0, %arg1 : i32, i32
  }
}

</mosaic_0001>

<llo_original>
// kernel: tpu_custom_call.1
$region0: #{tpu_custom_call.1}
  #allocation0 [shape = 'u32[]', space=smem, size = 0x4, offset = 0x4, fixed_abs, tag = 'smem constant byte address 0x4 - core index']
  #allocation1 [shape = 'u32[72,128]{1,0:T(1,128)}', space=vmem, size = 0x9000, scoped, tag = 'internal scratch']
  #allocation2 [shape = 'f32[16,128]{1,0:T(8,128)}', space=vmem, size = 0x2000, scoped, tag = 'scratch operand']
  %s0 = inlined_call_operand.hbm [shape: f32[16,128], index: 0, kind: input, shape index: {}]
  %s1 = inlined_call_operand.hbm [shape: f32[128,128], index: 1, kind: input, shape index: {}]
  %s2 = inlined_call_operand.vmem [shape: f32[1,128], index: 2, kind: input, shape index: {}]
  %s3 = inlined_call_operand.hbm [shape: f32[16,128], index: 3, kind: output, shape index: {}]
  %s4 = sld [smem:[#allocation0]]
  $region38: #{tpu_custom_call.1} parent=0
    _
  %s6 = ssub.s32 1, %s4
  %s7 = scalar_select 0, %s6, %s4
  $region1: #{tpu_custom_call.1} parent=0
    #allocation3 [shape = 'u8[8192]{0}', space=vmem, size = 0x2000, scoped, tag = 'input window, operand 0, single buffered']
    #allocation4 [shape = 's32[1]{0}', space=sflag, size = 0x4, scoped, tag = 'scoped memory for tpu_custom_call.1']
    #allocation5 [shape = 's32[1]{0}', space=sflag, size = 0x4, scoped, tag = 'scoped memory for tpu_custom_call.1']
    #allocation6 [shape = 'u8[65536]{0}', space=vmem, size = 0x10000, scoped, tag = 'input window, operand 1, single buffered']
    #allocation7 [shape = 's32[1]{0}', space=sflag, size = 0x4, scoped, tag = 'scoped memory for tpu_custom_call.1']
    #allocation8 [shape = 'u8[8192]{0}', space=vmem, size = 0x2000, scoped, tag = 'output window, operand 0, single buffered']
    %8 = vsyncpa [#allocation4], 0
    %9 = vsyncpa [#allocation7], 0
    %10 = vsyncpa [#allocation5], 0
    // Predicated region
    $region2: #{tpu_custom_call.1} parent=1 // pred_check
      _
    $region3: #{tpu_custom_call.1} parent=1 // pred_check_branch
      %12 = sbr.rel (0) target = $region5
    $region4: #{tpu_custom_call.1} parent=1 // pred_region
      %14 = vsyncadd [#allocation4], 0
      %s15 = sshll.u32 %s0, 4
      %s16 = int_to_ptr.hbm [resolvable:$true] %s15
      %s17 = sshll.u32 [#allocation3], 4
      %s18 = int_to_ptr.vmem [resolvable:$true] %s17
      %23 = dma.hbm_to_vmem [thread:$0]  %s16, 256, %s18, [#allocation4], 128, 128, 8
    $region5: #{tpu_custom_call.1} parent=1 // pred_fallthru
      _
    // Predicated region
    $region6: #{tpu_custom_call.1} parent=1 // pred_check
      _
    $region7: #{tpu_custom_call.1} parent=1 // pred_check_branch
      %25 = sbr.rel (0) target = $region9
    $region8: #{tpu_custom_call.1} parent=1 // pred_region
      %27 = vsyncadd [#allocation7], 0
      %s28 = sshll.u32 %s1, 4
      %s29 = int_to_ptr.hbm [resolvable:$true] %s28
      %s30 = sshll.u32 [#allocation6], 4
      %s31 = int_to_ptr.vmem [resolvable:$true] %s30
      %36 = dma.hbm_to_vmem [thread:$0]  %s29, 2048, %s31, [#allocation7], 128, 128, 8
    $region9: #{tpu_custom_call.1} parent=1 // pred_fallthru
      _
    // Predicated region
    $region10: #{tpu_custom_call.1} parent=1 // pred_check
      _
    $region11: #{tpu_custom_call.1} parent=1 // pred_check_branch
      %38 = sbr.rel (0) target = $region13
    $region12: #{tpu_custom_call.1} parent=1 // pred_region
      _
    $region13: #{tpu_custom_call.1} parent=1 // pred_fallthru
      _
    // Predicated region
    $region14: #{tpu_custom_call.1} parent=1 // pred_check
      _
    $region15: #{tpu_custom_call.1} parent=1 // pred_check_branch
      %40 = sbr.rel (0) target = $region17
    $region16: #{tpu_custom_call.1} parent=1 // pred_region
      %42 = dma.done [#allocation4], 256
    $region17: #{tpu_custom_call.1} parent=1 // pred_fallthru
      _
    // Predicated region
    $region18: #{tpu_custom_call.1} parent=1 // pred_check
      _
    $region19: #{tpu_custom_call.1} parent=1 // pred_check_branch
      %44 = sbr.rel (0) target = $region21
    $region20: #{tpu_custom_call.1} parent=1 // pred_region
      %46 = dma.done [#allocation7], 2048
    $region21: #{tpu_custom_call.1} parent=1 // pred_fallthru
      _
    %p47 = scmp.eq.s32.totalorder 0, 0
    // Predicated region
    $region22: #{tpu_custom_call.1} parent=1 // pred_check
      %p48 = pneg %p47
    $region23: #{tpu_custom_call.1} parent=1 // pred_check_branch
      %50 = sbr.rel (%p48) target = $region25
    $region24: #{tpu_custom_call.1} parent=1 // pred_region
      %51 = vst [vmem:[#allocation2] sm:$0xff] 0.0
      %52 = vst [vmem:[#allocation2 + $0x8] sm:$0xff] 0.0
    $region25: #{tpu_custom_call.1} parent=1 // pred_fallthru
      _
    %v53 = vld [vmem:[#allocation6] sm:$0xff]
    %v54 = vld [vmem:[#allocation6 + $0x8] sm:$0xff]
    %v55 = vld [vmem:[#allocation6 + $0x10] sm:$0xff]
    %v56 = vld [vmem:[#allocation6 + $0x18] sm:$0xff]
    %v57 = vld [vmem:[#allocation6 + $0x20] sm:$0xff]
    %v58 = vld [vmem:[#allocation6 + $0x28] sm:$0xff]
    %v59 = vld [vmem:[#allocation6 + $0x30] sm:$0xff]
    %v60 = vld [vmem:[#allocation6 + $0x38] sm:$0xff]
    %v61 = vld [vmem:[#allocation6 + $0x40] sm:$0xff]
    %v62 = vld [vmem:[#allocation6 + $0x48] sm:$0xff]
    %v63 = vld [vmem:[#allocation6 + $0x50] sm:$0xff]
    %v64 = vld [vmem:[#allocation6 + $0x58] sm:$0xff]
    %v65 = vld [vmem:[#allocation6 + $0x60] sm:$0xff]
    %v66 = vld [vmem:[#allocation6 + $0x68] sm:$0xff]
    %v67 = vld [vmem:[#allocation6 + $0x70] sm:$0xff]
    %v68 = vld [vmem:[#allocation6 + $0x78] sm:$0xff]
    %v69 = vmax.f32 %v53, 0.0
    %v70 = vmax.f32 %v54, 0.0
    %v71 = vmax.f32 %v55, 0.0
    %v72 = vmax.f32 %v56, 0.0
    %v73 = vmax.f32 %v57, 0.0
    %v74 = vmax.f32 %v58, 0.0
    %v75 = vmax.f32 %v59, 0.0
    %v76 = vmax.f32 %v60, 0.0
    %v77 = vmax.f32 %v61, 0.0
    %v78 = vmax.f32 %v62, 0.0
    %v79 = vmax.f32 %v63, 0.0
    %v80 = vmax.f32 %v64, 0.0
    %v81 = vmax.f32 %v65, 0.0
    %v82 = vmax.f32 %v66, 0.0
    %v83 = vmax.f32 %v67, 0.0
    %v84 = vmax.f32 %v68, 0.0
    %v85 = vsub.f32 0.0, %v53
    %v86 = vsub.f32 0.0, %v54
    %v87 = vsub.f32 0.0, %v55
    %v88 = vsub.f32 0.0, %v56
    %v89 = vsub.f32 0.0, %v57
    %v90 = vsub.f32 0.0, %v58
    %v91 = vsub.f32 0.0, %v59
    %v92 = vsub.f32 0.0, %v60
    %v93 = vsub.f32 0.0, %v61
    %v94 = vsub.f32 0.0, %v62
    %v95 = vsub.f32 0.0, %v63
    %v96 = vsub.f32 0.0, %v64
    %v97 = vsub.f32 0.0, %v65
    %v98 = vsub.f32 0.0, %v66
    %v99 = vsub.f32 0.0, %v67
    %v100 = vsub.f32 0.0, %v68
    %vm101 = vcmp.ne.f32.partialorder %v85, %v85
    %vm102 = vcmp.ne.f32.partialorder %v86, %v86
    %vm103 = vcmp.ne.f32.partialorder %v87, %v87
    %vm104 = vcmp.ne.f32.partialorder %v88, %v88
    %vm105 = vcmp.ne.f32.partialorder %v89, %v89
    %vm106 = vcmp.ne.f32.partialorder %v90, %v90
    %vm107 = vcmp.ne.f32.partialorder %v91, %v91
    %vm108 = vcmp.ne.f32.partialorder %v92, %v92
    %vm109 = vcmp.ne.f32.partialorder %v93, %v93
    %vm110 = vcmp.ne.f32.partialorder %v94, %v94
    %vm111 = vcmp.ne.f32.partialorder %v95, %v95
    %vm112 = vcmp.ne.f32.partialorder %v96, %v96
    %vm113 = vcmp.ne.f32.partialorder %v97, %v97
    %vm114 = vcmp.ne.f32.partialorder %v98, %v98
    %vm115 = vcmp.ne.f32.partialorder %v99, %v99
    %vm116 = vcmp.ne.f32.partialorder %v100, %v100
    %v117 = vadd.f32 %v53, 0.0
    %v118 = vadd.f32 %v54, 0.0
    %v119 = vadd.f32 %v55, 0.0
    %v120 = vadd.f32 %v56, 0.0
    %v121 = vadd.f32 %v57, 0.0
    %v122 = vadd.f32 %v58, 0.0
    %v123 = vadd.f32 %v59, 0.0
    %v124 = vadd.f32 %v60, 0.0
    %v125 = vadd.f32 %v61, 0.0
    %v126 = vadd.f32 %v62, 0.0
    %v127 = vadd.f32 %v63, 0.0
    %v128 = vadd.f32 %v64, 0.0
    %v129 = vadd.f32 %v65, 0.0
    %v130 = vadd.f32 %v66, 0.0
    %v131 = vadd.f32 %v67, 0.0
    %v132 = vadd.f32 %v68, 0.0
    %v133 = vand.u32 2147483647, %v85
    %v134 = vand.u32 2147483647, %v86
    %v135 = vand.u32 2147483647, %v87
    %v136 = vand.u32 2147483647, %v88
    %v137 = vand.u32 2147483647, %v89
    %v138 = vand.u32 2147483647, %v90
    %v139 = vand.u32 2147483647, %v91
    %v140 = vand.u32 2147483647, %v92
    %v141 = vand.u32 2147483647, %v93
    %v142 = vand.u32 2147483647, %v94
    %v143 = vand.u32 2147483647, %v95
    %v144 = vand.u32 2147483647, %v96
    %v145 = vand.u32 2147483647, %v97
    %v146 = vand.u32 2147483647, %v98
    %v147 = vand.u32 2147483647, %v99
    %v148 = vand.u32 2147483647, %v100
    %v149 = vsub.f32 0.0, %v133
    %v150 = vsub.f32 0.0, %v134
    %v151 = vsub.f32 0.0, %v135
    %v152 = vsub.f32 0.0, %v136
    %v153 = vsub.f32 0.0, %v137
    %v154 = vsub.f32 0.0, %v138
    %v155 = vsub.f32 0.0, %v139
    %v156 = vsub.f32 0.0, %v140
    %v157 = vsub.f32 0.0, %v141
    %v158 = vsub.f32 0.0, %v142
    %v159 = vsub.f32 0.0, %v143
    %v160 = vsub.f32 0.0, %v144
    %v161 = vsub.f32 0.0, %v145
    %v162 = vsub.f32 0.0, %v146
    %v163 = vsub.f32 0.0, %v147
    %v164 = vsub.f32 0.0, %v148
    %v165 = vmul.f32 %v149, 1.442695
    %v166 = vpow.pop %v165
    %v167 = vmul.f32 %v150, 1.442695
    %v168 = vpow.pop %v167
    %v169 = vmul.f32 %v151, 1.442695
    %v170 = vpow.pop %v169
    %v171 = vmul.f32 %v152, 1.442695
    %v172 = vpow.pop %v171
    %v173 = vmul.f32 %v153, 1.442695
    %v174 = vpow.pop %v173
    %v175 = vmul.f32 %v154, 1.442695
    %v176 = vpow.pop %v175
    %v177 = vmul.f32 %v155, 1.442695
    %v178 = vpow.pop %v177
    %v179 = vmul.f32 %v156, 1.442695
    %v180 = vpow.pop %v179
    %v181 = vmul.f32 %v157, 1.442695
    %v182 = vpow.pop %v181
    %v183 = vmul.f32 %v158, 1.442695
    %v184 = vpow.pop %v183
    %v185 = vmul.f32 %v159, 1.442695
    %v186 = vpow.pop %v185
    %v187 = vmul.f32 %v160, 1.442695
    %v188 = vpow.pop %v187
    %v189 = vmul.f32 %v161, 1.442695
    %v190 = vpow.pop %v189
    %v191 = vmul.f32 %v162, 1.442695
    %v192 = vpow.pop %v191
    %v193 = vmul.f32 %v163, 1.442695
    %v194 = vpow.pop %v193
    %v195 = vmul.f32 %v164, 1.442695
    %v196 = vpow.pop %v195
    %v197 = vadd.f32 %v166, 1.0
    %v198 = vlog2.pop %v197
    %v199 = vmul.f32 %v198, 0.6931472
    %v200 = vmul.f32 -0.5, %v166
    %v201 = vadd.f32 %v200, 1.0
    %v202 = vmul.f32 %v201, %v166
    %v203 = vand.u32 2147483647, %v166
    %vm204 = vcmp.lt.f32.partialorder %v203, 0.0004427343
    %v205 = vsel %vm204, %v202, %v199
    %v206 = vadd.f32 %v168, 1.0
    %v207 = vlog2.pop %v206
    %v208 = vmul.f32 %v207, 0.6931472
    %v209 = vmul.f32 -0.5, %v168
    %v210 = vadd.f32 %v209, 1.0
    %v211 = vmul.f32 %v210, %v168
    %v212 = vand.u32 2147483647, %v168
    %vm213 = vcmp.lt.f32.partialorder %v212, 0.0004427343
    %v214 = vsel %vm213, %v211, %v208
    %v215 = vadd.f32 %v170, 1.0
    %v216 = vlog2.pop %v215
    %v217 = vmul.f32 %v216, 0.6931472
    %v218 = vmul.f32 -0.5, %v170
    %v219 = vadd.f32 %v218, 1.0
    %v220 = vmul.f32 %v219, %v170
    %v221 = vand.u32 2147483647, %v170
    %vm222 = vcmp.lt.f32.partialorder %v221, 0.0004427343
    %v223 = vsel %vm222, %v220, %v217
    %v224 = vadd.f32 %v172, 1.0
    %v225 = vlog2.pop %v224
    %v226 = vmul.f32 %v225, 0.6931472
    %v227 = vmul.f32 -0.5, %v172
    %v228 = vadd.f32 %v227, 1.0
    %v229 = vmul.f32 %v228, %v172
    %v230 = vand.u32 2147483647, %v172
    %vm231 = vcmp.lt.f32.partialorder %v230, 0.0004427343
    %v232 = vsel %vm231, %v229, %v226
    %v233 = vadd.f32 %v174, 1.0
    %v234 = vlog2.pop %v233
    %v235 = vmul.f32 %v234, 0.6931472
    %v236 = vmul.f32 -0.5, %v174
    %v237 = vadd.f32 %v236, 1.0
    %v238 = vmul.f32 %v237, %v174
    %v239 = vand.u32 2147483647, %v174
    %vm240 = vcmp.lt.f32.partialorder %v239, 0.0004427343
    %v241 = vsel %vm240, %v238, %v235
    %v242 = vadd.f32 %v176, 1.0
    %v243 = vlog2.pop %v242
    %v244 = vmul.f32 %v243, 0.6931472
    %v245 = vmul.f32 -0.5, %v176
    %v246 = vadd.f32 %v245, 1.0
    %v247 = vmul.f32 %v246, %v176
    %v248 = vand.u32 2147483647, %v176
    %vm249 = vcmp.lt.f32.partialorder %v248, 0.0004427343
    %v250 = vsel %vm249, %v247, %v244
    %v251 = vadd.f32 %v178, 1.0
    %v252 = vlog2.pop %v251
    %v253 = vmul.f32 %v252, 0.6931472
    %v254 = vmul.f32 -0.5, %v178
    %v255 = vadd.f32 %v254, 1.0
    %v256 = vmul.f32 %v255, %v178
    %v257 = vand.u32 2147483647, %v178
    %vm258 = vcmp.lt.f32.partialorder %v257, 0.0004427343
    %v259 = vsel %vm258, %v256, %v253
    %v260 = vadd.f32 %v180, 1.0
    %v261 = vlog2.pop %v260
    %v262 = vmul.f32 %v261, 0.6931472
    %v263 = vmul.f32 -0.5, %v180
    %v264 = vadd.f32 %v263, 1.0
    %v265 = vmul.f32 %v264, %v180
    %v266 = vand.u32 2147483647, %v180
    %vm267 = vcmp.lt.f32.partialorder %v266, 0.0004427343
    %v268 = vsel %vm267, %v265, %v262
    %v269 = vadd.f32 %v182, 1.0
    %v270 = vlog2.pop %v269
    %v271 = vmul.f32 %v270, 0.6931472
    %v272 = vmul.f32 -0.5, %v182
    %v273 = vadd.f32 %v272, 1.0
    %v274 = vmul.f32 %v273, %v182
    %v275 = vand.u32 2147483647, %v182
    %vm276 = vcmp.lt.f32.partialorder %v275, 0.0004427343
    %v277 = vsel %vm276, %v274, %v271
    %v278 = vadd.f32 %v184, 1.0
    %v279 = vlog2.pop %v278
    %v280 = vmul.f32 %v279, 0.6931472
    %v281 = vmul.f32 -0.5, %v184
    %v282 = vadd.f32 %v281, 1.0
    %v283 = vmul.f32 %v282, %v184
    %v284 = vand.u32 2147483647, %v184
    %vm285 = vcmp.lt.f32.partialorder %v284, 0.0004427343
    %v286 = vsel %vm285, %v283, %v280
    %v287 = vadd.f32 %v186, 1.0
    %v288 = vlog2.pop %v287
    %v289 = vmul.f32 %v288, 0.6931472
    %v290 = vmul.f32 -0.5, %v186
    %v291 = vadd.f32 %v290, 1.0
    %v292 = vmul.f32 %v291, %v186
    %v293 = vand.u32 2147483647, %v186
    %vm294 = vcmp.lt.f32.partialorder %v293, 0.0004427343
    %v295 = vsel %vm294, %v292, %v289
    %v296 = vadd.f32 %v188, 1.0
    %v297 = vlog2.pop %v296
    %v298 = vmul.f32 %v297, 0.6931472
    %v299 = vmul.f32 -0.5, %v188
    %v300 = vadd.f32 %v299, 1.0
    %v301 = vmul.f32 %v300, %v188
    %v302 = vand.u32 2147483647, %v188
    %vm303 = vcmp.lt.f32.partialorder %v302, 0.0004427343
    %v304 = vsel %vm303, %v301, %v298
    %v305 = vadd.f32 %v190, 1.0
    %v306 = vlog2.pop %v305
    %v307 = vmul.f32 %v306, 0.6931472
    %v308 = vmul.f32 -0.5, %v190
    %v309 = vadd.f32 %v308, 1.0
    %v310 = vmul.f32 %v309, %v190
    %v311 = vand.u32 2147483647, %v190
    %vm312 = vcmp.lt.f32.partialorder %v311, 0.0004427343
    %v313 = vsel %vm312, %v310, %v307
    %v314 = vadd.f32 %v192, 1.0
    %v315 = vlog2.pop %v314
    %v316 = vmul.f32 %v315, 0.6931472
    %v317 = vmul.f32 -0.5, %v192
    %v318 = vadd.f32 %v317, 1.0
    %v319 = vmul.f32 %v318, %v192
    %v320 = vand.u32 2147483647, %v192
    %vm321 = vcmp.lt.f32.partialorder %v320, 0.0004427343
    %v322 = vsel %vm321, %v319, %v316
    %v323 = vadd.f32 %v194, 1.0
    %v324 = vlog2.pop %v323
    %v325 = vmul.f32 %v324, 0.6931472
    %v326 = vmul.f32 -0.5, %v194
    %v327 = vadd.f32 %v326, 1.0
    %v328 = vmul.f32 %v327, %v194
    %v329 = vand.u32 2147483647, %v194
    %vm330 = vcmp.lt.f32.partialorder %v329, 0.0004427343
    %v331 = vsel %vm330, %v328, %v325
    %v332 = vadd.f32 %v196, 1.0
    %v333 = vlog2.pop %v332
    %v334 = vmul.f32 %v333, 0.6931472
    %v335 = vmul.f32 -0.5, %v196
    %v336 = vadd.f32 %v335, 1.0
    %v337 = vmul.f32 %v336, %v196
    %v338 = vand.u32 2147483647, %v196
    %vm339 = vcmp.lt.f32.partialorder %v338, 0.0004427343
    %v340 = vsel %vm339, %v337, %v334
    %v341 = vadd.f32 %v69, %v205
    %v342 = vadd.f32 %v70, %v214
    %v343 = vadd.f32 %v71, %v223
    %v344 = vadd.f32 %v72, %v232
    %v345 = vadd.f32 %v73, %v241
    %v346 = vadd.f32 %v74, %v250
    %v347 = vadd.f32 %v75, %v259
    %v348 = vadd.f32 %v76, %v268
    %v349 = vadd.f32 %v77, %v277
    %v350 = vadd.f32 %v78, %v286
    %v351 = vadd.f32 %v79, %v295
    %v352 = vadd.f32 %v80, %v304
    %v353 = vadd.f32 %v81, %v313
    %v354 = vadd.f32 %v82, %v322
    %v355 = vadd.f32 %v83, %v331
    %v356 = vadd.f32 %v84, %v340
    %v357 = vsel %vm101, %v117, %v341
    %v358 = vsel %vm102, %v118, %v342
    %v359 = vsel %vm103, %v119, %v343
    %v360 = vsel %vm104, %v120, %v344
    %v361 = vsel %vm105, %v121, %v345
    %v362 = vsel %vm106, %v122, %v346
    %v363 = vsel %vm107, %v123, %v347
    %v364 = vsel %vm108, %v124, %v348
    %v365 = vsel %vm109, %v125, %v349
    %v366 = vsel %vm110, %v126, %v350
    %v367 = vsel %vm111, %v127, %v351
    %v368 = vsel %vm112, %v128, %v352
    %v369 = vsel %vm113, %v129, %v353
    %v370 = vsel %vm114, %v130, %v354
    %v371 = vsel %vm115, %v131, %v355
    %v372 = vsel %vm116, %v132, %v356
    %v373 = vld [vmem:[#allocation2] sm:$0xff]
    %v374 = vld [vmem:[#allocation2 + $0x8] sm:$0xff]
    %v375 = vld [vmem:[#allocation3] sm:$0xff]
    %v376 = vld [vmem:[#allocation3 + $0x8] sm:$0xff]
    %v377 = vand.u32 %v372, 4294901760
    %378 = vmatpush.msra.mxu0 %v377
    %v379 = vand.u32 %v371, 4294901760
    %380 = vmatpush.msra.mxu0 %v379
    %v381 = vand.u32 %v370, 4294901760
    %382 = vmatpush.msra.mxu0 %v381
    %v383 = vand.u32 %v369, 4294901760
    %384 = vmatpush.msra.mxu0 %v383
    %v385 = vand.u32 %v368, 4294901760
    %386 = vmatpush.msra.mxu0 %v385
    %v387 = vand.u32 %v367, 4294901760
    %388 = vmatpush.msra.mxu0 %v387
    %v389 = vand.u32 %v366, 4294901760
    %390 = vmatpush.msra.mxu0 %v389
    %v391 = vand.u32 %v365, 4294901760
    %392 = vmatpush.msra.mxu0 %v391
    %v393 = vand.u32 %v364, 4294901760
    %394 = vmatpush.msra.mxu0 %v393
    %v395 = vand.u32 %v363, 4294901760
    %396 = vmatpush.msra.mxu0 %v395
    %v397 = vand.u32 %v362, 4294901760
    %398 = vmatpush.msra.mxu0 %v397
    %v399 = vand.u32 %v361, 4294901760
    %400 = vmatpush.msra.mxu0 %v399
    %v401 = vand.u32 %v360, 4294901760
    %402 = vmatpush.msra.mxu0 %v401
    %v403 = vand.u32 %v359, 4294901760
    %404 = vmatpush.msra.mxu0 %v403
    %v405 = vand.u32 %v358, 4294901760
    %406 = vmatpush.msra.mxu0 %v405
    %v407 = vand.u32 %v357, 4294901760
    %408 = vmatpush.msra.mxu0 %v407
    %v409 = vand.u32 %v375, 4294901760
    %v410 = vsub.f32 %v375, %v409
    %v411 = vand.u32 %v410, 4294901760
    %v412 = vsub.f32 %v410, %v411
    %v413 = vand.u32 %v412, 4294901760
    %414 = vmatmul.f32.gmra.mxu0 %v413
    %v415 = vpop.f32.mrf.mxu0
    %v416 = vadd.f32 0.0, %v415
    %v417 = vand.u32 %v376, 4294901760
    %v418 = vsub.f32 %v376, %v417
    %v419 = vand.u32 %v418, 4294901760
    %v420 = vsub.f32 %v418, %v419
    %v421 = vand.u32 %v420, 4294901760
    %422 = vmatmul.f32.gmra.mxu0 %v421
    %v423 = vpop.f32.mrf.mxu0
    %v424 = vadd.f32 0.0, %v423
    %425 = vdwg.mxu0
    %v426 = vand.u32 %v372, 4294901760
    %v427 = vsub.f32 %v372, %v426
    %v428 = vand.u32 %v427, 4294901760
    %v429 = vsub.f32 %v427, %v428
    %v430 = vand.u32 %v429, 4294901760
    %431 = vmatpush.msra.mxu0 %v430
    %v432 = vand.u32 %v371, 4294901760
    %v433 = vsub.f32 %v371, %v432
    %v434 = vand.u32 %v433, 4294901760
    %v435 = vsub.f32 %v433, %v434
    %v436 = vand.u32 %v435, 4294901760
    %437 = vmatpush.msra.mxu0 %v436
    %v438 = vand.u32 %v370, 4294901760
    %v439 = vsub.f32 %v370, %v438
    %v440 = vand.u32 %v439, 4294901760
    %v441 = vsub.f32 %v439, %v440
    %v442 = vand.u32 %v441, 4294901760
    %443 = vmatpush.msra.mxu0 %v442
    %v444 = vand.u32 %v369, 4294901760
    %v445 = vsub.f32 %v369, %v444
    %v446 = vand.u32 %v445, 4294901760
    %v447 = vsub.f32 %v445, %v446
    %v448 = vand.u32 %v447, 4294901760
    %449 = vmatpush.msra.mxu0 %v448
    %v450 = vand.u32 %v368, 4294901760
    %v451 = vsub.f32 %v368, %v450
    %v452 = vand.u32 %v451, 4294901760
    %v453 = vsub.f32 %v451, %v452
    %v454 = vand.u32 %v453, 4294901760
    %455 = vmatpush.msra.mxu0 %v454
    %v456 = vand.u32 %v367, 4294901760
    %v457 = vsub.f32 %v367, %v456
    %v458 = vand.u32 %v457, 4294901760
    %v459 = vsub.f32 %v457, %v458
    %v460 = vand.u32 %v459, 4294901760
    %461 = vmatpush.msra.mxu0 %v460
    %v462 = vand.u32 %v366, 4294901760
    %v463 = vsub.f32 %v366, %v462
    %v464 = vand.u32 %v463, 4294901760
    %v465 = vsub.f32 %v463, %v464
    %v466 = vand.u32 %v465, 4294901760
    %467 = vmatpush.msra.mxu0 %v466
    %v468 = vand.u32 %v365, 4294901760
    %v469 = vsub.f32 %v365, %v468
    %v470 = vand.u32 %v469, 4294901760
    %v471 = vsub.f32 %v469, %v470
    %v472 = vand.u32 %v471, 4294901760
    %473 = vmatpush.msra.mxu0 %v472
    %v474 = vand.u32 %v364, 4294901760
    %v475 = vsub.f32 %v364, %v474
    %v476 = vand.u32 %v475, 4294901760
    %v477 = vsub.f32 %v475, %v476
    %v478 = vand.u32 %v477, 4294901760
    %479 = vmatpush.msra.mxu0 %v478
    %v480 = vand.u32 %v363, 4294901760
    %v481 = vsub.f32 %v363, %v480
    %v482 = vand.u32 %v481, 4294901760
    %v483 = vsub.f32 %v481, %v482
    %v484 = vand.u32 %v483, 4294901760
    %485 = vmatpush.msra.mxu0 %v484
    %v486 = vand.u32 %v362, 4294901760
    %v487 = vsub.f32 %v362, %v486
    %v488 = vand.u32 %v487, 4294901760
    %v489 = vsub.f32 %v487, %v488
    %v490 = vand.u32 %v489, 4294901760
    %491 = vmatpush.msra.mxu0 %v490
    %v492 = vand.u32 %v361, 4294901760
    %v493 = vsub.f32 %v361, %v492
    %v494 = vand.u32 %v493, 4294901760
    %v495 = vsub.f32 %v493, %v494
    %v496 = vand.u32 %v495, 4294901760
    %497 = vmatpush.msra.mxu0 %v496
    %v498 = vand.u32 %v360, 4294901760
    %v499 = vsub.f32 %v360, %v498
    %v500 = vand.u32 %v499, 4294901760
    %v501 = vsub.f32 %v499, %v500
    %v502 = vand.u32 %v501, 4294901760
    %503 = vmatpush.msra.mxu0 %v502
    %v504 = vand.u32 %v359, 4294901760
    %v505 = vsub.f32 %v359, %v504
    %v506 = vand.u32 %v505, 4294901760
    %v507 = vsub.f32 %v505, %v506
    %v508 = vand.u32 %v507, 4294901760
    %509 = vmatpush.msra.mxu0 %v508
    %v510 = vand.u32 %v358, 4294901760
    %v511 = vsub.f32 %v358, %v510
    %v512 = vand.u32 %v511, 4294901760
    %v513 = vsub.f32 %v511, %v512
    %v514 = vand.u32 %v513, 4294901760
    %515 = vmatpush.msra.mxu0 %v514
    %v516 = vand.u32 %v357, 4294901760
    %v517 = vsub.f32 %v357, %v516
    %v518 = vand.u32 %v517, 4294901760
    %v519 = vsub.f32 %v517, %v518
    %v520 = vand.u32 %v519, 4294901760
    %521 = vmatpush.msra.mxu0 %v520
    %v522 = vand.u32 %v375, 4294901760
    %523 = vmatmul.f32.gmra.mxu0 %v522
    %v524 = vpop.f32.mrf.mxu0
    %v525 = vadd.f32 %v416, %v524
    %v526 = vand.u32 %v376, 4294901760
    %527 = vmatmul.f32.gmra.mxu0 %v526
    %v528 = vpop.f32.mrf.mxu0
    %v529 = vadd.f32 %v424, %v528
    %530 = vdwg.mxu0
    %v531 = vand.u32 %v372, 4294901760
    %v532 = vsub.f32 %v372, %v531
    %533 = vmatpush.msra.mxu0 %v532
    %v534 = vand.u32 %v371, 4294901760
    %v535 = vsub.f32 %v371, %v534
    %536 = vmatpush.msra.mxu0 %v535
    %v537 = vand.u32 %v370, 4294901760
    %v538 = vsub.f32 %v370, %v537
    %539 = vmatpush.msra.mxu0 %v538
    %v540 = vand.u32 %v369, 4294901760
    %v541 = vsub.f32 %v369, %v540
    %542 = vmatpush.msra.mxu0 %v541
    %v543 = vand.u32 %v368, 4294901760
    %v544 = vsub.f32 %v368, %v543
    %545 = vmatpush.msra.mxu0 %v544
    %v546 = vand.u32 %v367, 4294901760
    %v547 = vsub.f32 %v367, %v546
    %548 = vmatpush.msra.mxu0 %v547
    %v549 = vand.u32 %v366, 4294901760
    %v550 = vsub.f32 %v366, %v549
    %551 = vmatpush.msra.mxu0 %v550
    %v552 = vand.u32 %v365, 4294901760
    %v553 = vsub.f32 %v365, %v552
    %554 = vmatpush.msra.mxu0 %v553
    %v555 = vand.u32 %v364, 4294901760
    %v556 = vsub.f32 %v364, %v555
    %557 = vmatpush.msra.mxu0 %v556
    %v558 = vand.u32 %v363, 4294901760
    %v559 = vsub.f32 %v363, %v558
    %560 = vmatpush.msra.mxu0 %v559
    %v561 = vand.u32 %v362, 4294901760
    %v562 = vsub.f32 %v362, %v561
    %563 = vmatpush.msra.mxu0 %v562
    %v564 = vand.u32 %v361, 4294901760
    %v565 = vsub.f32 %v361, %v564
    %566 = vmatpush.msra.mxu0 %v565
    %v567 = vand.u32 %v360, 4294901760
    %v568 = vsub.f32 %v360, %v567
    %569 = vmatpush.msra.mxu0 %v568
    %v570 = vand.u32 %v359, 4294901760
    %v571 = vsub.f32 %v359, %v570
    %572 = vmatpush.msra.mxu0 %v571
    %v573 = vand.u32 %v358, 4294901760
    %v574 = vsub.f32 %v358, %v573
    %575 = vmatpush.msra.mxu0 %v574
    %v576 = vand.u32 %v357, 4294901760
    %v577 = vsub.f32 %v357, %v576
    %578 = vmatpush.msra.mxu0 %v577
    %v579 = vand.u32 %v375, 4294901760
    %v580 = vsub.f32 %v375, %v579
    %581 = vmatmul.f32.gmra.mxu0 %v580
    %v582 = vpop.f32.mrf.mxu0
    %v583 = vadd.f32 %v525, %v582
    %v584 = vand.u32 %v376, 4294901760
    %v585 = vsub.f32 %v376, %v584
    %586 = vmatmul.f32.gmra.mxu0 %v585
    %v587 = vpop.f32.mrf.mxu0
    %v588 = vadd.f32 %v529, %v587
    %589 = vdwg.mxu0
    %v590 = vand.u32 %v372, 4294901760
    %591 = vmatpush.msra.mxu0 %v590
    %v592 = vand.u32 %v371, 4294901760
    %593 = vmatpush.msra.mxu0 %v592
    %v594 = vand.u32 %v370, 4294901760
    %595 = vmatpush.msra.mxu0 %v594
    %v596 = vand.u32 %v369, 4294901760
    %597 = vmatpush.msra.mxu0 %v596
    %v598 = vand.u32 %v368, 4294901760
    %599 = vmatpush.msra.mxu0 %v598
    %v600 = vand.u32 %v367, 4294901760
    %601 = vmatpush.msra.mxu0 %v600
    %v602 = vand.u32 %v366, 4294901760
    %603 = vmatpush.msra.mxu0 %v602
    %v604 = vand.u32 %v365, 4294901760
    %605 = vmatpush.msra.mxu0 %v604
    %v606 = vand.u32 %v364, 4294901760
    %607 = vmatpush.msra.mxu0 %v606
    %v608 = vand.u32 %v363, 4294901760
    %609 = vmatpush.msra.mxu0 %v608
    %v610 = vand.u32 %v362, 4294901760
    %611 = vmatpush.msra.mxu0 %v610
    %v612 = vand.u32 %v361, 4294901760
    %613 = vmatpush.msra.mxu0 %v612
    %v614 = vand.u32 %v360, 4294901760
    %615 = vmatpush.msra.mxu0 %v614
    %v616 = vand.u32 %v359, 4294901760
    %617 = vmatpush.msra.mxu0 %v616
    %v618 = vand.u32 %v358, 4294901760
    %619 = vmatpush.msra.mxu0 %v618
    %v620 = vand.u32 %v357, 4294901760
    %621 = vmatpush.msra.mxu0 %v620
    %v622 = vand.u32 %v375, 4294901760
    %v623 = vsub.f32 %v375, %v622
    %v624 = vand.u32 %v623, 4294901760
    %625 = vmatmul.f32.gmra.mxu0 %v624
    %v626 = vpop.f32.mrf.mxu0
    %v627 = vadd.f32 %v583, %v626
    %v628 = vand.u32 %v376, 4294901760
    %v629 = vsub.f32 %v376, %v628
    %v630 = vand.u32 %v629, 4294901760
    %631 = vmatmul.f32.gmra.mxu0 %v630
    %v632 = vpop.f32.mrf.mxu0
    %v633 = vadd.f32 %v588, %v632
    %634 = vdwg.mxu0
    %v635 = vand.u32 %v372, 4294901760
    %v636 = vsub.f32 %v372, %v635
    %v637 = vand.u32 %v636, 4294901760
    %638 = vmatpush.msra.mxu0 %v637
    %v639 = vand.u32 %v371, 4294901760
    %v640 = vsub.f32 %v371, %v639
    %v641 = vand.u32 %v640, 4294901760
    %642 = vmatpush.msra.mxu0 %v641
    %v643 = vand.u32 %v370, 4294901760
    %v644 = vsub.f32 %v370, %v643
    %v645 = vand.u32 %v644, 4294901760
    %646 = vmatpush.msra.mxu0 %v645
    %v647 = vand.u32 %v369, 4294901760
    %v648 = vsub.f32 %v369, %v647
    %v649 = vand.u32 %v648, 4294901760
    %650 = vmatpush.msra.mxu0 %v649
    %v651 = vand.u32 %v368, 4294901760
    %v652 = vsub.f32 %v368, %v651
    %v653 = vand.u32 %v652, 4294901760
    %654 = vmatpush.msra.mxu0 %v653
    %v655 = vand.u32 %v367, 4294901760
    %v656 = vsub.f32 %v367, %v655
    %v657 = vand.u32 %v656, 4294901760
    %658 = vmatpush.msra.mxu0 %v657
    %v659 = vand.u32 %v366, 4294901760
    %v660 = vsub.f32 %v366, %v659
    %v661 = vand.u32 %v660, 4294901760
    %662 = vmatpush.msra.mxu0 %v661
    %v663 = vand.u32 %v365, 4294901760
    %v664 = vsub.f32 %v365, %v663
    %v665 = vand.u32 %v664, 4294901760
    %666 = vmatpush.msra.mxu0 %v665
    %v667 = vand.u32 %v364, 4294901760
    %v668 = vsub.f32 %v364, %v667
    %v669 = vand.u32 %v668, 4294901760
    %670 = vmatpush.msra.mxu0 %v669
    %v671 = vand.u32 %v363, 4294901760
    %v672 = vsub.f32 %v363, %v671
    %v673 = vand.u32 %v672, 4294901760
    %674 = vmatpush.msra.mxu0 %v673
    %v675 = vand.u32 %v362, 4294901760
    %v676 = vsub.f32 %v362, %v675
    %v677 = vand.u32 %v676, 4294901760
    %678 = vmatpush.msra.mxu0 %v677
    %v679 = vand.u32 %v361, 4294901760
    %v680 = vsub.f32 %v361, %v679
    %v681 = vand.u32 %v680, 4294901760
    %682 = vmatpush.msra.mxu0 %v681
    %v683 = vand.u32 %v360, 4294901760
    %v684 = vsub.f32 %v360, %v683
    %v685 = vand.u32 %v684, 4294901760
    %686 = vmatpush.msra.mxu0 %v685
    %v687 = vand.u32 %v359, 4294901760
    %v688 = vsub.f32 %v359, %v687
    %v689 = vand.u32 %v688, 4294901760
    %690 = vmatpush.msra.mxu0 %v689
    %v691 = vand.u32 %v358, 4294901760
    %v692 = vsub.f32 %v358, %v691
    %v693 = vand.u32 %v692, 4294901760
    %694 = vmatpush.msra.mxu0 %v693
    %v695 = vand.u32 %v357, 4294901760
    %v696 = vsub.f32 %v357, %v695
    %v697 = vand.u32 %v696, 4294901760
    %698 = vmatpush.msra.mxu0 %v697
    %v699 = vand.u32 %v375, 4294901760
    %700 = vmatmul.f32.gmra.mxu0 %v699
    %v701 = vpop.f32.mrf.mxu0
    %v702 = vadd.f32 %v627, %v701
    %v703 = vand.u32 %v376, 4294901760
    %704 = vmatmul.f32.gmra.mxu0 %v703
    %v705 = vpop.f32.mrf.mxu0
    %v706 = vadd.f32 %v633, %v705
    %707 = vdwg.mxu0
    %v708 = vand.u32 %v372, 4294901760
    %709 = vmatpush.msra.mxu0 %v708
    %v710 = vand.u32 %v371, 4294901760
    %711 = vmatpush.msra.mxu0 %v710
    %v712 = vand.u32 %v370, 4294901760
    %713 = vmatpush.msra.mxu0 %v712
    %v714 = vand.u32 %v369, 4294901760
    %715 = vmatpush.msra.mxu0 %v714
    %v716 = vand.u32 %v368, 4294901760
    %717 = vmatpush.msra.mxu0 %v716
    %v718 = vand.u32 %v367, 4294901760
    %719 = vmatpush.msra.mxu0 %v718
    %v720 = vand.u32 %v366, 4294901760
    %721 = vmatpush.msra.mxu0 %v720
    %v722 = vand.u32 %v365, 4294901760
    %723 = vmatpush.msra.mxu0 %v722
    %v724 = vand.u32 %v364, 4294901760
    %725 = vmatpush.msra.mxu0 %v724
    %v726 = vand.u32 %v363, 4294901760
    %727 = vmatpush.msra.mxu0 %v726
    %v728 = vand.u32 %v362, 4294901760
    %729 = vmatpush.msra.mxu0 %v728
    %v730 = vand.u32 %v361, 4294901760
    %731 = vmatpush.msra.mxu0 %v730
    %v732 = vand.u32 %v360, 4294901760
    %733 = vmatpush.msra.mxu0 %v732
    %v734 = vand.u32 %v359, 4294901760
    %735 = vmatpush.msra.mxu0 %v734
    %v736 = vand.u32 %v358, 4294901760
    %737 = vmatpush.msra.mxu0 %v736
    %v738 = vand.u32 %v357, 4294901760
    %739 = vmatpush.msra.mxu0 %v738
    %v740 = vand.u32 %v375, 4294901760
    %741 = vmatmul.f32.gmra.mxu0 %v740
    %v742 = vpop.f32.mrf.mxu0
    %v743 = vadd.f32 %v702, %v742
    %v744 = vand.u32 %v376, 4294901760
    %745 = vmatmul.f32.gmra.mxu0 %v744
    %v746 = vpop.f32.mrf.mxu0
    %v747 = vadd.f32 %v706, %v746
    %748 = vdwg.mxu0
    %v749 = vadd.f32 %v373, %v743
    %v750 = vadd.f32 %v374, %v747
    %751 = vst [vmem:[#allocation2] sm:$0xff] %v749
    %752 = vst [vmem:[#allocation2 + $0x8] sm:$0xff] %v750
    // Predicated region
    $region26: #{tpu_custom_call.1} parent=1 // pred_check
      %p753 = pneg %p47
    $region27: #{tpu_custom_call.1} parent=1 // pred_check_branch
      %755 = sbr.rel (%p753) target = $region29
    $region28: #{tpu_custom_call.1} parent=1 // pred_region
      %v756 = vld [vmem:[#allocation2] sm:$0xff]
      %v757 = vld [vmem:[#allocation2 + $0x8] sm:$0xff]
      %v758 = vld [vmem:[%s2] sm:$0x1]
      %v760 = vperm.slane %v758, 0
      %v762 = vadd.f32 %v756, %v760
      %v763 = vadd.f32 %v757, %v760
      %764 = vst [vmem:[#allocation8] sm:$0xff] %v762
      %765 = vst [vmem:[#allocation8 + $0x8] sm:$0xff] %v763
    $region29: #{tpu_custom_call.1} parent=1 // pred_fallthru
      _
    // Predicated region
    $region30: #{tpu_custom_call.1} parent=1 // pred_check
      _
    $region31: #{tpu_custom_call.1} parent=1 // pred_check_branch
      %767 = sbr.rel (0) target = $region33
    $region32: #{tpu_custom_call.1} parent=1 // pred_region
      %769 = vsyncadd [#allocation5], 0
      %s770 = sshll.u32 [#allocation8], 4
      %s771 = int_to_ptr.vmem [resolvable:$true] %s770
      %s772 = sshll.u32 %s3, 4
      %s773 = int_to_ptr.hbm [resolvable:$true] %s772
      %778 = dma.vmem_to_hbm [thread:$0]  %s771, 256, %s773, [#allocation5], 128, 128, 8
    $region33: #{tpu_custom_call.1} parent=1 // pred_fallthru
      _
    // Predicated region
    $region34: #{tpu_custom_call.1} parent=1 // pred_check
      _
    $region35: #{tpu_custom_call.1} parent=1 // pred_check_branch
      %780 = sbr.rel (0) target = $region37
    $region36: #{tpu_custom_call.1} parent=1 // pred_region
      %782 = dma.done [#allocation5], 256
    $region37: #{tpu_custom_call.1} parent=1 // pred_fallthru
      _
    %783 = vsyncpa [#allocation4], 1
    %784 = vsyncpa [#allocation7], 1
    %785 = vsyncpa [#allocation5], 1

</llo_original>
